<compile_context>
chip_gen: v7x
topology: tpu7x:2x2x1
jax: 0.10.0
libtpu: 0.0.40
codegen_flags: <defaults>
</compile_context>

<pallas_src>
import functools

import jax
import jax.numpy as jnp
from jax import lax
from jax.experimental import pallas as pl
from jax.experimental.pallas import tpu as pltpu


def _gcn_kernel(*refs, K, N, H):
    """One graph instance per grid step; everything lane-dense in VMEM."""
    f32 = jnp.float32
    NH = N * H

    it = iter(refs)
    a1_ref = e_ref = eye_ref = rbig_ref = None
    if K >= 2:
        a1_ref = next(it)                  # (N, N)        A[1]
        e_ref = next(it)                   # (N, Ed)       conv_E
    if K >= 3:
        eye_ref = next(it)                 # (N, N)        identity (subtrahend only)
        rbig_ref = next(it)                # ((K-1)N, (K-1)NH)  block-diag replication
    xt_ref = next(it)                      # (B*C, N)      x transposed
    r_ref = next(it)                       # (N, NH)       replication matrix
    w_ref = next(it)                       # (K*B*C, NH)   weights, row order (k, b, i)
    sel_ref = next(it)                     # (Bpad, K*B*C) 0/1 per-batch row-sum selector
    b_ref = next(it)                       # (Bpad, NH)    bias tile
    out_ref = next(it)                     # (Bpad, NH)
    u_ref = next(it) if K >= 3 else None   # scratch slab (N, (K-1)*N)

    xT = xt_ref[...]
    R = r_ref[...]

    # k = 0 (identity support): replicate x straight to the lane-dense layout.
    pieces = [jnp.dot(xT, R, preferred_element_type=f32)]              # (B*C, NH)

    if K >= 2:
        A1 = a1_ref[...]
        E = e_ref[...]
        # conv_E_l = A1 @ conv_E ;  logitsT = relu(conv_E_l @ conv_E^T)^T
        El = jnp.dot(A1, E, preferred_element_type=f32)                # (N, Ed)
        logitsT = lax.dot_general(E, El, (((1,), (1,)), ((), ())),
                                  preferred_element_type=f32)          # (N, N)
        logitsT = jnp.maximum(logitsT, 0.0)
        # Reference softmax is over dim=1 of logits -> axis 0 of logitsT.
        mcol = jnp.max(logitsT, axis=0, keepdims=True)
        p = jnp.exp(logitsT - mcol)
        denom = jnp.sum(p, axis=0, keepdims=True)
        # Exact reciprocal keeps the strict 1e-4 f32 check; approx=True (EUP vrcp)
        # is a micro-win to enable after validation (review correctness note).
        St = p * pl.reciprocal(denom, approx=False)                    # S^T, (N, N)

        if K == 2:
            urep = jnp.dot(St, R, preferred_element_type=f32)          # (N, NH)
            pieces.append(jnp.dot(xT, urep, preferred_element_type=f32))
        else:
            # Transposed Chebyshev recurrence U_k = U_{k-1} @ (2 S^T) - U_{k-2},
            # written straight into the VMEM scratch slab (no concatenate copy).
            u_ref[:, 0:N] = St
            St2 = 2.0 * St
            prev2, prev1 = eye_ref[...], St
            for k in range(2, K):
                nxt = jnp.dot(prev1, St2, preferred_element_type=f32) - prev2
                u_ref[:, (k - 1) * N:k * N] = nxt
                prev2, prev1 = prev1, nxt
            # Replicate all supports to the lane-dense width in one dot, then apply
            # them to x in one dot (lane-aligned 128-wide slices per k afterwards).
            # TODO(synk): at large N replace this 0/1 replication matmul with a
            # layout-level broadcast and tile the node axis over a grid (v7x: 64 MiB VMEM).
            urep = jnp.dot(u_ref[...], rbig_ref[...], preferred_element_type=f32)
            grep = jnp.dot(xT, urep, preferred_element_type=f32)       # (B*C, (K-1)*NH)
            for k in range(1, K):
                pieces.append(grep[:, (k - 1) * NH:k * NH])

    # Lane-dense stack, rows ordered (k, b, i); every piece is (B*C, 128).
    gstack = jnp.concatenate(pieces, axis=0)                           # (K*B*C, NH)
    prod = gstack * w_ref[...]
    # One selector matmul performs every per-batch reduction at once and pads the
    # result to 8 sublanes -> full unmasked output tile store.
    out = jnp.dot(sel_ref[...], prod, preferred_element_type=f32) + b_ref[...]
    out_ref[...] = out.astype(out_ref.dtype)


def _vmem_limit_bytes():
    """Generation-aware VMEM request: ~3/4 of physical, capped at 100 MiB."""
    try:
        cap = int(pltpu.get_tpu_info().vmem_capacity_bytes)
        return int(min(cap * 3 // 4, 100 * 1024 * 1024))
    except Exception:
        return 32 * 1024 * 1024


@functools.partial(jax.jit, static_argnames=("K",))
def gcn_forward_batched(A, conv_E, x, weight, bias, *, K):
    """Batched GCN forward: T independent graph instances in one pallas_call.

    A: (T, 2, N, N), conv_E: (T, N, Ed), x: (T, B, N, C),
    weight: (N, K, C, H), bias: (H,)  ->  (T, B, N, H)
    """
    f32 = jnp.float32
    T, B, N, C = x.shape
    H = weight.shape[-1]
    Ed = conv_E.shape[-1]
    NH, BC = N * H, B * C
    KBC = K * BC
    Bpad = ((B + 7) // 8) * 8
    assert weight.shape == (N, K, C, H), "weight_dim must equal node_num"

    # ---- wrapper-side layout & 0/1 constants (constant-folded by XLA) ----
    xT = jnp.transpose(x, (0, 1, 3, 2)).reshape(T, BC, N).astype(f32)  # rows = b*C+i

    # R[m, n*H + o] = (m == n): replicate each node column over its H lanes.
    R = (jnp.arange(N)[:, None] == (jnp.arange(NH)[None, :] // H)).astype(f32)

    # W_ord[(k*B + b)*C + i, n*H + o] = weight[n, k, i, o]
    w_kin = jnp.transpose(weight, (1, 2, 0, 3)).reshape(K, C, NH)
    W_ord = jnp.broadcast_to(w_kin[:, None], (K, B, C, NH)).reshape(KBC, NH).astype(f32)

    # Sel[r, k*BC + b*C + i] = (r == b) for r < B; rows >= B are zero padding.
    rr = jnp.arange(Bpad)[:, None]
    cc = jnp.arange(KBC)[None, :]
    Sel = ((rr == (cc % BC) // C) & (rr < B)).astype(f32)

    bias_pad = jnp.broadcast_to(jnp.tile(bias.astype(f32), N)[None, :], (Bpad, NH))

    def inst_spec(shape):   # per-instance tensor: leading T axis squeezed by the grid
        n = len(shape)
        return pl.BlockSpec((None,) + shape, lambda t: (t,) + (0,) * n)

    def const_spec(shape):  # shared constant: same block every step (not re-DMA'd)
        n = len(shape)
        return pl.BlockSpec(shape, lambda t: (0,) * n)

    inputs, in_specs = [], []
    if K >= 2:
        inputs += [A[:, 1].astype(f32), conv_E.astype(f32)]   # only A[1] is DMA'd
        in_specs += [inst_spec((N, N)), inst_spec((N, Ed))]
    if K >= 3:
        eye = jnp.eye(N, dtype=f32)
        r2 = jnp.arange((K - 1) * N)[:, None]
        c2 = jnp.arange((K - 1) * NH)[None, :]
        Rbig = ((r2 // N == c2 // NH) & (r2 % N == (c2 % NH) // H)).astype(f32)
        inputs += [eye, Rbig]
        in_specs += [const_spec((N, N)), const_spec(((K - 1) * N, (K - 1) * NH))]
    inputs += [xT, R, W_ord, Sel, bias_pad]
    in_specs += [inst_spec((BC, N)), const_spec((N, NH)), const_spec((KBC, NH)),
                 const_spec((Bpad, KBC)), const_spec((Bpad, NH))]

    scratch = [pltpu.VMEM((N, (K - 1) * N), f32)] if K >= 3 else []

    # Advisory cost estimate.
    step_flops = 2 * BC * N * NH + 2 * Bpad * KBC * NH + KBC * NH
    if K >= 2:
        step_flops += 4 * N * N * Ed + 2 * BC * N * (K - 1) * NH
        if K >= 3:
            step_flops += 2 * (K - 2) * N ** 3 + 2 * (K - 1) * (K - 1) * N * N * NH
        else:
            step_flops += 2 * N * N * NH
    cost = pl.CostEstimate(
        flops=int(T * step_flops),
        transcendentals=int(T * N * N) if K >= 2 else 0,
        bytes_accessed=int(4 * (sum(a.size for a in inputs) + T * Bpad * NH)))

    out = pl.pallas_call(
        functools.partial(_gcn_kernel, K=K, N=N, H=H),
        out_shape=jax.ShapeDtypeStruct((T, Bpad, NH), f32),
        grid=(T,),
        in_specs=in_specs,
        out_specs=pl.BlockSpec((None, Bpad, NH), lambda t: (t, 0, 0)),
        scratch_shapes=scratch,
        compiler_params=pltpu.CompilerParams(
            dimension_semantics=("parallel",),
            vmem_limit_bytes=_vmem_limit_bytes()),
        cost_estimate=cost,
    )(*inputs)
    return out[:, :B, :].reshape(T, B, N, H)


def gcn_forward(A, conv_E, x, weight, bias, *, K):
    """Module-faithful single-graph forward: A (2,N,N), conv_E (N,Ed), x (B,N,C)."""
    return gcn_forward_batched(A[None], conv_E[None], x[None], weight, bias, K=K)[0]


def gcn_reference(A, conv_E, x, weight, bias, *, K):
    """Pure-JAX mirror of the PyTorch forward, for correctness checking."""
    A1 = A[1]
    El = A1 @ conv_E
    S = jax.nn.softmax(jax.nn.relu(El @ conv_E.T), axis=1)
    N = x.shape[1]
    supp = [jnp.eye(N, dtype=jnp.float32), S]
    for _ in range(2, K):
        supp.append(2.0 * S @ supp[-1] - supp[-2])
    supports = jnp.stack(supp[:K], axis=0)                     # (K, N, N)
    x_g = jnp.einsum('knm,bmc->bknc', supports, x)
    x_g = jnp.transpose(x_g, (0, 2, 1, 3))                     # (B, N, K, C)
    return jnp.einsum('bnki,nkio->bno', x_g, weight) + bias


if __name__ == "__main__":
    # Small, module-consistent shapes (N*H = 128 -> lane-dense output).
    K = 3    # number of Chebyshev supports
    C = 4    # input_dim
    H = 16   # hidden_dim
    N = 8    # node_num (== weight_dim)
    Ed = 6   # embedding dim of conv_E
    B = 2    # batch
    T = 4    # graph instances / timesteps batched into one pallas_call

    key = jax.random.PRNGKey(0)
    kA, kE, kx, kw = jax.random.split(key, 4)

    A = jax.random.normal(kA, (T, 2, N, N), dtype=jnp.float32)
    conv_E = jax.random.normal(kE, (T, N, Ed), dtype=jnp.float32)
    x = jax.random.normal(kx, (T, B, N, C), dtype=jnp.float32)

    # Deterministic xavier-normal-ish init for weight (N, K, C, H); bias init to 0.
    fan_in, fan_out = K * C, K * H
    std = (2.0 / (fan_in + fan_out)) ** 0.5
    weight = std * jax.random.normal(kw, (N, K, C, H), dtype=jnp.float32)
    bias = jnp.zeros((H,), dtype=jnp.float32)

    # Single-graph (module-faithful) path: same kernel with a T=1 grid.
    out1 = jax.block_until_ready(gcn_forward(A[0], conv_E[0], x[0], weight, bias, K=K))
    ref1 = gcn_reference(A[0], conv_E[0], x[0], weight, bias, K=K)
    assert out1.shape == (B, N, H)
    assert jnp.allclose(out1, ref1, atol=1e-4, rtol=1e-4), "single-graph mismatch"

    # Batched path: T instances amortize launch latency over one grid (parallel axis).
    outT = jax.block_until_ready(gcn_forward_batched(A, conv_E, x, weight, bias, K=K))
    refT = jnp.stack([gcn_reference(A[t], conv_E[t], x[t], weight, bias, K=K)
                      for t in range(T)])
    assert outT.shape == (T, B, N, H)
    assert jnp.allclose(outT, refT, atol=1e-4, rtol=1e-4), "batched mismatch"

    print("KERNEL_OK")
</pallas_src>

<mosaic_0001>
module attributes {stable_mosaic.version = 11 : i64} {
  func.func @_gcn_kernel(%arg0: i32, %arg1: memref<1x8x8xf32, #tpu.memory_space<vmem>>, %arg2: memref<1x8x6xf32, #tpu.memory_space<vmem>>, %arg3: memref<8x8xf32, #tpu.memory_space<vmem>>, %arg4: memref<16x256xf32, #tpu.memory_space<vmem>>, %arg5: memref<1x8x8xf32, #tpu.memory_space<vmem>>, %arg6: memref<8x128xf32, #tpu.memory_space<vmem>>, %arg7: memref<24x128xf32, #tpu.memory_space<vmem>>, %arg8: memref<8x24xf32, #tpu.memory_space<vmem>>, %arg9: memref<8x128xf32, #tpu.memory_space<vmem>>, %arg10: memref<1x8x128xf32, #tpu.memory_space<vmem>>, %arg11: memref<8x16xf32, #tpu.memory_space<vmem>>) attributes {dimension_semantics = [#tpu.dimension_semantics<parallel>], iteration_bounds = array<i64: 1>, scalar_prefetch = 0 : i64, scratch_operands = 1 : i64, tpu.core_type = #tpu.core_type<tc>, window_params = [{transform_indices = @transform_0, window_bounds = array<i64: 1, 8, 8>}, {transform_indices = @transform_1, window_bounds = array<i64: 1, 8, 6>}, {pipeline_mode = #tpu.pipeline_mode<synchronous>, transform_indices = @transform_2, window_bounds = array<i64: 8, 8>}, {pipeline_mode = #tpu.pipeline_mode<synchronous>, transform_indices = @transform_3, window_bounds = array<i64: 16, 256>}, {transform_indices = @transform_4, window_bounds = array<i64: 1, 8, 8>}, {pipeline_mode = #tpu.pipeline_mode<synchronous>, transform_indices = @transform_5, window_bounds = array<i64: 8, 128>}, {pipeline_mode = #tpu.pipeline_mode<synchronous>, transform_indices = @transform_6, window_bounds = array<i64: 24, 128>}, {pipeline_mode = #tpu.pipeline_mode<synchronous>, transform_indices = @transform_7, window_bounds = array<i64: 8, 24>}, {pipeline_mode = #tpu.pipeline_mode<synchronous>, transform_indices = @transform_8, window_bounds = array<i64: 8, 128>}, {transform_indices = @transform_9, window_bounds = array<i64: 1, 8, 128>}]} {
    %c0 = arith.constant 0 : index
    %c0_0 = arith.constant 0 : index
    %c0_1 = arith.constant 0 : index
    %0 = vector.load %arg5[%c0, %c0_0, %c0_1] : memref<1x8x8xf32, #tpu.memory_space<vmem>>, vector<1x8x8xf32>
    %1 = vector.shape_cast %0 : vector<1x8x8xf32> to vector<8x8xf32>
    %c0_2 = arith.constant 0 : index
    %c0_3 = arith.constant 0 : index
    %2 = vector.load %arg6[%c0_2, %c0_3] : memref<8x128xf32, #tpu.memory_space<vmem>>, vector<8x128xf32>
    %cst = arith.constant dense<0.000000e+00> : vector<8x128xf32>
    %3 = tpu.matmul %1, %2, %cst {dimension_numbers = #tpu.dot_dimension_numbers<[1], [0], [0], [1], [0, 0, 1, 1], [], []>} : vector<8x8xf32>, vector<8x128xf32>, vector<8x128xf32> -> vector<8x128xf32>
    %c0_4 = arith.constant 0 : index
    %c0_5 = arith.constant 0 : index
    %c0_6 = arith.constant 0 : index
    %4 = vector.load %arg1[%c0_4, %c0_5, %c0_6] : memref<1x8x8xf32, #tpu.memory_space<vmem>>, vector<1x8x8xf32>
    %5 = vector.shape_cast %4 : vector<1x8x8xf32> to vector<8x8xf32>
    %c0_7 = arith.constant 0 : index
    %c0_8 = arith.constant 0 : index
    %c0_9 = arith.constant 0 : index
    %6 = vector.load %arg2[%c0_7, %c0_8, %c0_9] : memref<1x8x6xf32, #tpu.memory_space<vmem>>, vector<1x8x6xf32>
    %7 = vector.shape_cast %6 : vector<1x8x6xf32> to vector<8x6xf32>
    %cst_10 = arith.constant dense<0.000000e+00> : vector<8x6xf32>
    %8 = tpu.matmul %5, %7, %cst_10 {dimension_numbers = #tpu.dot_dimension_numbers<[1], [0], [0], [1], [0, 0, 1, 1], [], []>} : vector<8x8xf32>, vector<8x6xf32>, vector<8x6xf32> -> vector<8x6xf32>
    %cst_11 = arith.constant dense<0.000000e+00> : vector<8x8xf32>
    %9 = tpu.matmul %7, %8, %cst_11 {dimension_numbers = #tpu.dot_dimension_numbers<[1], [1], [0], [0], [0, 0, 1, 0], [], []>} : vector<8x6xf32>, vector<8x6xf32>, vector<8x8xf32> -> vector<8x8xf32>
    %cst_12 = arith.constant 0.000000e+00 : f32
    %10 = vector.broadcast %cst_12 : f32 to vector<8x8xf32>
    %11 = arith.maximumf %9, %10 : vector<8x8xf32>
    %cst_13 = arith.constant dense<0xFF800000> : vector<8xf32>
    %12 = vector.multi_reduction <maximumf>, %11, %cst_13 [0] : vector<8x8xf32> to vector<8xf32>
    %13 = vector.shape_cast %12 : vector<8xf32> to vector<1x8xf32>
    %14 = vector.broadcast %13 : vector<1x8xf32> to vector<8x8xf32>
    %15 = arith.subf %11, %14 : vector<8x8xf32>
    %16 = math.exp %15 : vector<8x8xf32>
    %cst_14 = arith.constant dense<0.000000e+00> : vector<8xf32>
    %17 = vector.multi_reduction <add>, %16, %cst_14 [0] : vector<8x8xf32> to vector<8xf32>
    %18 = vector.shape_cast %17 : vector<8xf32> to vector<1x8xf32>
    %19 = tpu.reciprocal %18 : vector<1x8xf32> -> vector<1x8xf32>
    %20 = vector.broadcast %19 : vector<1x8xf32> to vector<8x8xf32>
    %21 = arith.mulf %16, %20 : vector<8x8xf32>
    %c0_15 = arith.constant 0 : index
    %c0_16 = arith.constant 0 : index
    %22 = vector.load %arg11[%c0_15, %c0_16] : memref<8x16xf32, #tpu.memory_space<vmem>>, vector<8x8xf32>
    tpu.vector_store %arg11[%c0_15, %c0_16], %21 {strides = array<i32>} : memref<8x16xf32, #tpu.memory_space<vmem>>, vector<8x8xf32>,
    %cst_17 = arith.constant 2.000000e+00 : f32
    %23 = vector.broadcast %cst_17 : f32 to vector<8x8xf32>
    %24 = arith.mulf %23, %21 : vector<8x8xf32>
    %c0_18 = arith.constant 0 : index
    %c0_19 = arith.constant 0 : index
    %25 = vector.load %arg3[%c0_18, %c0_19] : memref<8x8xf32, #tpu.memory_space<vmem>>, vector<8x8xf32>
    %cst_20 = arith.constant dense<0.000000e+00> : vector<8x8xf32>
    %26 = tpu.matmul %21, %24, %cst_20 {dimension_numbers = #tpu.dot_dimension_numbers<[1], [0], [0], [1], [0, 0, 1, 1], [], []>} : vector<8x8xf32>, vector<8x8xf32>, vector<8x8xf32> -> vector<8x8xf32>
    %27 = arith.subf %26, %25 : vector<8x8xf32>
    %c0_21 = arith.constant 0 : index
    %c8 = arith.constant 8 : index
    %28 = vector.load %arg11[%c0_21, %c8] : memref<8x16xf32, #tpu.memory_space<vmem>>, vector<8x8xf32>
    tpu.vector_store %arg11[%c0_21, %c8], %27 {strides = array<i32>} : memref<8x16xf32, #tpu.memory_space<vmem>>, vector<8x8xf32>,
    %c0_22 = arith.constant 0 : index
    %c0_23 = arith.constant 0 : index
    %29 = vector.load %arg11[%c0_22, %c0_23] : memref<8x16xf32, #tpu.memory_space<vmem>>, vector<8x16xf32>
    %c0_24 = arith.constant 0 : index
    %c0_25 = arith.constant 0 : index
    %30 = vector.load %arg4[%c0_24, %c0_25] : memref<16x256xf32, #tpu.memory_space<vmem>>, vector<16x256xf32>
    %cst_26 = arith.constant dense<0.000000e+00> : vector<8x256xf32>
    %31 = tpu.matmul %29, %30, %cst_26 {dimension_numbers = #tpu.dot_dimension_numbers<[1], [0], [0], [1], [0, 0, 1, 1], [], []>} : vector<8x16xf32>, vector<16x256xf32>, vector<8x256xf32> -> vector<8x256xf32>
    %cst_27 = arith.constant dense<0.000000e+00> : vector<8x256xf32>
    %32 = tpu.matmul %1, %31, %cst_27 {dimension_numbers = #tpu.dot_dimension_numbers<[1], [0], [0], [1], [0, 0, 1, 1], [], []>} : vector<8x8xf32>, vector<8x256xf32>, vector<8x256xf32> -> vector<8x256xf32>
    %33 = vector.extract_strided_slice %32 {offsets = [0, 0], sizes = [8, 128], strides = [1, 1]} : vector<8x256xf32> to vector<8x128xf32>
    %34 = vector.extract_strided_slice %32 {offsets = [0, 128], sizes = [8, 128], strides = [1, 1]} : vector<8x256xf32> to vector<8x128xf32>
    %35 = tpu.concatenate %3, %33, %34 in 0 : vector<8x128xf32>, vector<8x128xf32>, vector<8x128xf32> -> vector<24x128xf32>
    %c0_28 = arith.constant 0 : index
    %c0_29 = arith.constant 0 : index
    %36 = vector.load %arg7[%c0_28, %c0_29] : memref<24x128xf32, #tpu.memory_space<vmem>>, vector<24x128xf32>
    %37 = arith.mulf %35, %36 : vector<24x128xf32>
    %c0_30 = arith.constant 0 : index
    %c0_31 = arith.constant 0 : index
    %38 = vector.load %arg8[%c0_30, %c0_31] : memref<8x24xf32, #tpu.memory_space<vmem>>, vector<8x24xf32>
    %cst_32 = arith.constant dense<0.000000e+00> : vector<8x128xf32>
    %39 = tpu.matmul %38, %37, %cst_32 {dimension_numbers = #tpu.dot_dimension_numbers<[1], [0], [0], [1], [0, 0, 1, 1], [], []>} : vector<8x24xf32>, vector<24x128xf32>, vector<8x128xf32> -> vector<8x128xf32>
    %c0_33 = arith.constant 0 : index
    %c0_34 = arith.constant 0 : index
    %40 = vector.load %arg9[%c0_33, %c0_34] : memref<8x128xf32, #tpu.memory_space<vmem>>, vector<8x128xf32>
    %41 = arith.addf %39, %40 : vector<8x128xf32>
    %c0_35 = arith.constant 0 : index
    %c0_36 = arith.constant 0 : index
    %c0_37 = arith.constant 0 : index
    %42 = vector.load %arg10[%c0_35, %c0_36, %c0_37] : memref<1x8x128xf32, #tpu.memory_space<vmem>>, vector<1x8x128xf32>
    %43 = vector.shape_cast %42 : vector<1x8x128xf32> to vector<8x128xf32>
    %44 = vector.shape_cast %41 : vector<8x128xf32> to vector<1x8x128xf32>
    tpu.vector_store %arg10[%c0_35, %c0_36, %c0_37], %44 {strides = array<i32>} : memref<1x8x128xf32, #tpu.memory_space<vmem>>, vector<1x8x128xf32>,
    return
  }
  func.func @transform_0(%arg0: i32) -> (i32, i32, i32) {
    %c0_i32 = arith.constant 0 : i32
    %c0_i32_0 = arith.constant 0 : i32
    %c0_i32_1 = arith.constant 0 : i32
    return %arg0, %c0_i32, %c0_i32_0 : i32, i32, i32
  }
  func.func @transform_1(%arg0: i32) -> (i32, i32, i32) {
    %c0_i32 = arith.constant 0 : i32
    %c0_i32_0 = arith.constant 0 : i32
    %c0_i32_1 = arith.constant 0 : i32
    return %arg0, %c0_i32, %c0_i32_0 : i32, i32, i32
  }
  func.func @transform_2(%arg0: i32) -> (i32, i32) {
    %c0_i32 = arith.constant 0 : i32
    %c0_i32_0 = arith.constant 0 : i32
    %c0_i32_1 = arith.constant 0 : i32
    return %c0_i32, %c0_i32_0 : i32, i32
  }
  func.func @transform_3(%arg0: i32) -> (i32, i32) {
    %c0_i32 = arith.constant 0 : i32
    %c0_i32_0 = arith.constant 0 : i32
    %c0_i32_1 = arith.constant 0 : i32
    return %c0_i32, %c0_i32_0 : i32, i32
  }
  func.func @transform_4(%arg0: i32) -> (i32, i32, i32) {
    %c0_i32 = arith.constant 0 : i32
    %c0_i32_0 = arith.constant 0 : i32
    %c0_i32_1 = arith.constant 0 : i32
    return %arg0, %c0_i32, %c0_i32_0 : i32, i32, i32
  }
  func.func @transform_5(%arg0: i32) -> (i32, i32) {
    %c0_i32 = arith.constant 0 : i32
    %c0_i32_0 = arith.constant 0 : i32
    %c0_i32_1 = arith.constant 0 : i32
    return %c0_i32, %c0_i32_0 : i32, i32
  }
  func.func @transform_6(%arg0: i32) -> (i32, i32) {
    %c0_i32 = arith.constant 0 : i32
    %c0_i32_0 = arith.constant 0 : i32
    %c0_i32_1 = arith.constant 0 : i32
    return %c0_i32, %c0_i32_0 : i32, i32
  }
  func.func @transform_7(%arg0: i32) -> (i32, i32) {
    %c0_i32 = arith.constant 0 : i32
    %c0_i32_0 = arith.constant 0 : i32
    %c0_i32_1 = arith.constant 0 : i32
    return %c0_i32, %c0_i32_0 : i32, i32
  }
  func.func @transform_8(%arg0: i32) -> (i32, i32) {
    %c0_i32 = arith.constant 0 : i32
    %c0_i32_0 = arith.constant 0 : i32
    %c0_i32_1 = arith.constant 0 : i32
    return %c0_i32, %c0_i32_0 : i32, i32
  }
  func.func @transform_9(%arg0: i32) -> (i32, i32, i32) {
    %c0_i32 = arith.constant 0 : i32
    %c0_i32_0 = arith.constant 0 : i32
    %c0_i32_1 = arith.constant 0 : i32
    return %arg0, %c0_i32, %c0_i32_0 : i32, i32, i32
  }
}

</mosaic_0001>

<llo_original>
// kernel: tile.8
$region0: #{tile.8}
  #allocation0 [shape = 's32[1]{0}', space=sflag, size = 0x4, scoped, tag = 'scoped memory for tile.8']
  %s0 = inlined_call_operand.vmem [shape: f32[16], index: 0, kind: input, shape index: {}]
  %s1 = inlined_call_operand.vmem [shape: f32[8,16], index: 1, kind: output, shape index: {}]
  // Predicated region
  $region2: #{tile.8} parent=0 // pred_check
    _
  $region3: #{tile.8} parent=0 // pred_check_branch
    %3 = sbr.rel (0) target = $region5
  $region4: #{tile.8} parent=0 // pred_region
    _
  $region5: #{tile.8} parent=0 // pred_fallthru
    _
  %v4 = vld [vmem:[%s0] ss:$0 sm:$0xff]
  %5 = vst [vmem:[%s1] sm:$0xff] %v4

// kernel: gcn_forward_batched.1
$region0: #{gcn_forward_batched.1}
  #allocation0 [shape = 'u32[]', space=smem, size = 0x4, offset = 0x4, fixed_abs, tag = 'smem constant byte address 0x4 - core index']
  #allocation1 [shape = 'u32[144,128]{1,0:T(1,128)}', space=vmem, size = 0x12000, scoped, tag = 'internal scratch']
  #allocation2 [shape = 'f32[8,16]{1,0:T(8,128)}', space=vmem, size = 0x1000, scoped, tag = 'scratch operand']
  %s0 = inlined_call_operand.vmem [shape: f32[1,8,8], index: 0, kind: input, shape index: {}]
  %s1 = inlined_call_operand.vmem [shape: f32[1,8,6], index: 1, kind: input, shape index: {}]
  %s2 = inlined_call_operand.vmem [shape: f32[8,8], index: 2, kind: input, shape index: {}]
  %s3 = inlined_call_operand.vmem [shape: f32[16,256], index: 3, kind: input, shape index: {}]
  %s4 = inlined_call_operand.vmem [shape: f32[1,8,8], index: 4, kind: input, shape index: {}]
  %s5 = inlined_call_operand.vmem [shape: f32[8,128], index: 5, kind: input, shape index: {}]
  %s6 = inlined_call_operand.vmem [shape: f32[24,128], index: 6, kind: input, shape index: {}]
  %s7 = inlined_call_operand.vmem [shape: f32[8,24], index: 7, kind: input, shape index: {}]
  %s8 = inlined_call_operand.vmem [shape: f32[8,128], index: 8, kind: input, shape index: {}]
  %s9 = inlined_call_operand.vmem [shape: f32[1,8,128], index: 9, kind: output, shape index: {}]
  %s10 = sld [smem:[#allocation0]]
  $region46: #{gcn_forward_batched.1} parent=0
    _
  %s12 = ssub.s32 1, %s10
  %s13 = scalar_select 0, %s12, %s10
  // Predicated region
  $region2: #{gcn_forward_batched.1} parent=0 // pred_check
    _
  $region3: #{gcn_forward_batched.1} parent=0 // pred_check_branch
    %15 = sbr.rel (0) target = $region5
  $region4: #{gcn_forward_batched.1} parent=0 // pred_region
    _
  $region5: #{gcn_forward_batched.1} parent=0 // pred_fallthru
    _
  // Predicated region
  $region6: #{gcn_forward_batched.1} parent=0 // pred_check
    _
  $region7: #{gcn_forward_batched.1} parent=0 // pred_check_branch
    %17 = sbr.rel (0) target = $region9
  $region8: #{gcn_forward_batched.1} parent=0 // pred_region
    _
  $region9: #{gcn_forward_batched.1} parent=0 // pred_fallthru
    _
  // Predicated region
  $region10: #{gcn_forward_batched.1} parent=0 // pred_check
    _
  $region11: #{gcn_forward_batched.1} parent=0 // pred_check_branch
    %19 = sbr.rel (0) target = $region13
  $region12: #{gcn_forward_batched.1} parent=0 // pred_region
    _
  $region13: #{gcn_forward_batched.1} parent=0 // pred_fallthru
    _
  // Predicated region
  $region14: #{gcn_forward_batched.1} parent=0 // pred_check
    _
  $region15: #{gcn_forward_batched.1} parent=0 // pred_check_branch
    %21 = sbr.rel (0) target = $region17
  $region16: #{gcn_forward_batched.1} parent=0 // pred_region
    _
  $region17: #{gcn_forward_batched.1} parent=0 // pred_fallthru
    _
  // Predicated region
  $region18: #{gcn_forward_batched.1} parent=0 // pred_check
    _
  $region19: #{gcn_forward_batched.1} parent=0 // pred_check_branch
    %23 = sbr.rel (0) target = $region21
  $region20: #{gcn_forward_batched.1} parent=0 // pred_region
    _
  $region21: #{gcn_forward_batched.1} parent=0 // pred_fallthru
    _
  // Predicated region
  $region22: #{gcn_forward_batched.1} parent=0 // pred_check
    _
  $region23: #{gcn_forward_batched.1} parent=0 // pred_check_branch
    %25 = sbr.rel (0) target = $region25
  $region24: #{gcn_forward_batched.1} parent=0 // pred_region
    _
  $region25: #{gcn_forward_batched.1} parent=0 // pred_fallthru
    _
  // Predicated region
  $region26: #{gcn_forward_batched.1} parent=0 // pred_check
    _
  $region27: #{gcn_forward_batched.1} parent=0 // pred_check_branch
    %27 = sbr.rel (0) target = $region29
  $region28: #{gcn_forward_batched.1} parent=0 // pred_region
    _
  $region29: #{gcn_forward_batched.1} parent=0 // pred_fallthru
    _
  // Predicated region
  $region30: #{gcn_forward_batched.1} parent=0 // pred_check
    _
  $region31: #{gcn_forward_batched.1} parent=0 // pred_check_branch
    %29 = sbr.rel (0) target = $region33
  $region32: #{gcn_forward_batched.1} parent=0 // pred_region
    _
  $region33: #{gcn_forward_batched.1} parent=0 // pred_fallthru
    _
  // Predicated region
  $region34: #{gcn_forward_batched.1} parent=0 // pred_check
    _
  $region35: #{gcn_forward_batched.1} parent=0 // pred_check_branch
    %31 = sbr.rel (0) target = $region37
  $region36: #{gcn_forward_batched.1} parent=0 // pred_region
    _
  $region37: #{gcn_forward_batched.1} parent=0 // pred_fallthru
    _
  %v32 = vld [vmem:[%s4] sm:$0xff]
  %v33 = vld [vmem:[%s5] sm:$0xff]
  %vm34 = vcmask 64512
  %v36 = vsel %vm34, %v32, 0
  %38 = vmatprep.subr.mxu0 0.0
  %39 = vmatpush1.msra.mxu0 %v33
  %40 = vmatprep.subr.mxu0 0.0
  %41 = vmatpush1.msra.mxu0 0.0
  %42 = vmatprep.subr.mxu0 0.0
  %43 = vmatpush1.msra.mxu0 0.0
  %44 = vmatprep.subr.mxu0 0.0
  %45 = vmatpush1.msra.mxu0 0.0
  %46 = vmatprep.subr.mxu0 0.0
  %47 = vmatpush1.msra.mxu0 0.0
  %48 = vmatprep.subr.mxu0 0.0
  %49 = vmatpush1.msra.mxu0 0.0
  %50 = vmatprep.subr.mxu0 0.0
  %51 = vmatpush1.msra.mxu0 0.0
  %52 = vmatprep.subr.mxu0 0.0
  %53 = vmatpush1.msra.mxu0 0.0
  %54 = vmatprep.subr.mxu0 0.0
  %55 = vmatpush1.msra.mxu0 0.0
  %56 = vmatprep.subr.mxu0 0.0
  %57 = vmatpush1.msra.mxu0 0.0
  %58 = vmatprep.subr.mxu0 0.0
  %59 = vmatpush1.msra.mxu0 0.0
  %60 = vmatprep.subr.mxu0 0.0
  %61 = vmatpush1.msra.mxu0 0.0
  %62 = vmatprep.subr.mxu0 0.0
  %63 = vmatpush1.msra.mxu0 0.0
  %64 = vmatprep.subr.mxu0 0.0
  %65 = vmatpush1.msra.mxu0 0.0
  %66 = vmatprep.subr.mxu0 0.0
  %67 = vmatpush1.msra.mxu0 0.0
  %68 = vmatprep.subr.mxu0 0.0
  %69 = vmatpush1.msra.mxu0 0.0
  %70 = vmatprep.subr.mxu0 0.0
  %71 = vmatpush1.msra.mxu0 0.0
  %72 = vmatprep.subr.mxu0 0.0
  %73 = vmatpush1.msra.mxu0 0.0
  %74 = vmatprep.subr.mxu0 0.0
  %75 = vmatpush1.msra.mxu0 0.0
  %76 = vmatprep.subr.mxu0 0.0
  %77 = vmatpush1.msra.mxu0 0.0
  %78 = vmatprep.subr.mxu0 0.0
  %79 = vmatpush1.msra.mxu0 0.0
  %80 = vmatprep.subr.mxu0 0.0
  %81 = vmatpush1.msra.mxu0 0.0
  %82 = vmatprep.subr.mxu0 0.0
  %83 = vmatpush1.msra.mxu0 0.0
  %84 = vmatprep.subr.mxu0 0.0
  %85 = vmatpush1.msra.mxu0 0.0
  %86 = vmatprep.subr.mxu0 0.0
  %87 = vmatpush1.msra.mxu0 0.0
  %88 = vmatprep.subr.mxu0 0.0
  %89 = vmatpush1.msra.mxu0 0.0
  %90 = vmatprep.subr.mxu0 0.0
  %91 = vmatpush1.msra.mxu0 0.0
  %92 = vmatprep.subr.mxu0 0.0
  %93 = vmatpush1.msra.mxu0 0.0
  %94 = vmatprep.subr.mxu0 0.0
  %95 = vmatpush1.msra.mxu0 0.0
  %96 = vmatprep.subr.mxu0 0.0
  %97 = vmatpush1.msra.mxu0 0.0
  %98 = vmatprep.subr.mxu0 0.0
  %99 = vmatpush1.msra.mxu0 0.0
  %100 = vmatprep.subr.mxu0 0.0
  %101 = vmatpush1.msra.mxu0 0.0
  %102 = vmatprep.mubr.f32.mxu0 0.0
  %103 = vmatmul.mubr.f32.gmra.mrb[0].mxu0 %v36
  %v104 = vpop.f32.mrb[0].mxu0
  %v105 = vadd.f32 0.0, %v104
  %v106 = vpop.f32.mrb[0].mxu0
  %107 = vdwg.mxu0
  %v108 = vld [vmem:[%s0] sm:$0xff]
  %v109 = vld [vmem:[%s1] sm:$0xff]
  %v111 = vsel %vm34, %v108, 0
  %113 = vmatprep.subr.mxu0 0.0
  %114 = vmatpush1.msra.mxu0 %v109
  %115 = vmatprep.subr.mxu0 0.0
  %116 = vmatpush1.msra.mxu0 0.0
  %117 = vmatprep.subr.mxu0 0.0
  %118 = vmatpush1.msra.mxu0 0.0
  %119 = vmatprep.subr.mxu0 0.0
  %120 = vmatpush1.msra.mxu0 0.0
  %121 = vmatprep.subr.mxu0 0.0
  %122 = vmatpush1.msra.mxu0 0.0
  %123 = vmatprep.subr.mxu0 0.0
  %124 = vmatpush1.msra.mxu0 0.0
  %125 = vmatprep.subr.mxu0 0.0
  %126 = vmatpush1.msra.mxu0 0.0
  %127 = vmatprep.subr.mxu0 0.0
  %128 = vmatpush1.msra.mxu0 0.0
  %129 = vmatprep.subr.mxu0 0.0
  %130 = vmatpush1.msra.mxu0 0.0
  %131 = vmatprep.subr.mxu0 0.0
  %132 = vmatpush1.msra.mxu0 0.0
  %133 = vmatprep.subr.mxu0 0.0
  %134 = vmatpush1.msra.mxu0 0.0
  %135 = vmatprep.subr.mxu0 0.0
  %136 = vmatpush1.msra.mxu0 0.0
  %137 = vmatprep.subr.mxu0 0.0
  %138 = vmatpush1.msra.mxu0 0.0
  %139 = vmatprep.subr.mxu0 0.0
  %140 = vmatpush1.msra.mxu0 0.0
  %141 = vmatprep.subr.mxu0 0.0
  %142 = vmatpush1.msra.mxu0 0.0
  %143 = vmatprep.subr.mxu0 0.0
  %144 = vmatpush1.msra.mxu0 0.0
  %145 = vmatprep.subr.mxu0 0.0
  %146 = vmatpush1.msra.mxu0 0.0
  %147 = vmatprep.subr.mxu0 0.0
  %148 = vmatpush1.msra.mxu0 0.0
  %149 = vmatprep.subr.mxu0 0.0
  %150 = vmatpush1.msra.mxu0 0.0
  %151 = vmatprep.subr.mxu0 0.0
  %152 = vmatpush1.msra.mxu0 0.0
  %153 = vmatprep.subr.mxu0 0.0
  %154 = vmatpush1.msra.mxu0 0.0
  %155 = vmatprep.subr.mxu0 0.0
  %156 = vmatpush1.msra.mxu0 0.0
  %157 = vmatprep.subr.mxu0 0.0
  %158 = vmatpush1.msra.mxu0 0.0
  %159 = vmatprep.subr.mxu0 0.0
  %160 = vmatpush1.msra.mxu0 0.0
  %161 = vmatprep.subr.mxu0 0.0
  %162 = vmatpush1.msra.mxu0 0.0
  %163 = vmatprep.subr.mxu0 0.0
  %164 = vmatpush1.msra.mxu0 0.0
  %165 = vmatprep.subr.mxu0 0.0
  %166 = vmatpush1.msra.mxu0 0.0
  %167 = vmatprep.subr.mxu0 0.0
  %168 = vmatpush1.msra.mxu0 0.0
  %169 = vmatprep.subr.mxu0 0.0
  %170 = vmatpush1.msra.mxu0 0.0
  %171 = vmatprep.subr.mxu0 0.0
  %172 = vmatpush1.msra.mxu0 0.0
  %173 = vmatprep.subr.mxu0 0.0
  %174 = vmatpush1.msra.mxu0 0.0
  %175 = vmatprep.subr.mxu0 0.0
  %176 = vmatpush1.msra.mxu0 0.0
  %177 = vmatprep.mubr.f32.mxu0 0.0
  %178 = vmatmul.mubr.f32.gmra.mrb[0].mxu0 %v111
  %v179 = vpop.f32.mrb[0].mxu0
  %v180 = vadd.f32 0.0, %v179
  %v181 = vpop.f32.mrb[0].mxu0
  %182 = vdwg.mxu0
  %vm183 = vcmask 48128
  %v185 = vsel %vm183, %v109, 0
  %v188 = vsel %vm183, %v180, 0
  %190 = vmatprep.subr.mxu0 0.0
  %191 = vmatpush1.xpose.msra.mxu0 %v188
  %192 = vmatprep.subr.mxu0 0.0
  %193 = vmatpush1.xpose.msra.mxu0 0.0
  %194 = vmatprep.subr.mxu0 0.0
  %195 = vmatpush1.xpose.msra.mxu0 0.0
  %196 = vmatprep.subr.mxu0 0.0
  %197 = vmatpush1.xpose.msra.mxu0 0.0
  %198 = vmatprep.subr.mxu0 0.0
  %199 = vmatpush1.xpose.msra.mxu0 0.0
  %200 = vmatprep.subr.mxu0 0.0
  %201 = vmatpush1.xpose.msra.mxu0 0.0
  %202 = vmatprep.subr.mxu0 0.0
  %203 = vmatpush1.xpose.msra.mxu0 0.0
  %204 = vmatprep.subr.mxu0 0.0
  %205 = vmatpush1.xpose.msra.mxu0 0.0
  %206 = vmatprep.subr.mxu0 0.0
  %207 = vmatpush1.xpose.msra.mxu0 0.0
  %208 = vmatprep.subr.mxu0 0.0
  %209 = vmatpush1.xpose.msra.mxu0 0.0
  %210 = vmatprep.subr.mxu0 0.0
  %211 = vmatpush1.xpose.msra.mxu0 0.0
  %212 = vmatprep.subr.mxu0 0.0
  %213 = vmatpush1.xpose.msra.mxu0 0.0
  %214 = vmatprep.subr.mxu0 0.0
  %215 = vmatpush1.xpose.msra.mxu0 0.0
  %216 = vmatprep.subr.mxu0 0.0
  %217 = vmatpush1.xpose.msra.mxu0 0.0
  %218 = vmatprep.subr.mxu0 0.0
  %219 = vmatpush1.xpose.msra.mxu0 0.0
  %220 = vmatprep.subr.mxu0 0.0
  %221 = vmatpush1.xpose.msra.mxu0 0.0
  %222 = vmatprep.subr.mxu0 0.0
  %223 = vmatpush1.xpose.msra.mxu0 0.0
  %224 = vmatprep.subr.mxu0 0.0
  %225 = vmatpush1.xpose.msra.mxu0 0.0
  %226 = vmatprep.subr.mxu0 0.0
  %227 = vmatpush1.xpose.msra.mxu0 0.0
  %228 = vmatprep.subr.mxu0 0.0
  %229 = vmatpush1.xpose.msra.mxu0 0.0
  %230 = vmatprep.subr.mxu0 0.0
  %231 = vmatpush1.xpose.msra.mxu0 0.0
  %232 = vmatprep.subr.mxu0 0.0
  %233 = vmatpush1.xpose.msra.mxu0 0.0
  %234 = vmatprep.subr.mxu0 0.0
  %235 = vmatpush1.xpose.msra.mxu0 0.0
  %236 = vmatprep.subr.mxu0 0.0
  %237 = vmatpush1.xpose.msra.mxu0 0.0
  %238 = vmatprep.subr.mxu0 0.0
  %239 = vmatpush1.xpose.msra.mxu0 0.0
  %240 = vmatprep.subr.mxu0 0.0
  %241 = vmatpush1.xpose.msra.mxu0 0.0
  %242 = vmatprep.subr.mxu0 0.0
  %243 = vmatpush1.xpose.msra.mxu0 0.0
  %244 = vmatprep.subr.mxu0 0.0
  %245 = vmatpush1.xpose.msra.mxu0 0.0
  %246 = vmatprep.subr.mxu0 0.0
  %247 = vmatpush1.xpose.msra.mxu0 0.0
  %248 = vmatprep.subr.mxu0 0.0
  %249 = vmatpush1.xpose.msra.mxu0 0.0
  %250 = vmatprep.subr.mxu0 0.0
  %251 = vmatpush1.xpose.msra.mxu0 0.0
  %252 = vmatprep.subr.mxu0 0.0
  %253 = vmatpush1.xpose.msra.mxu0 0.0
  %254 = vmatprep.mubr.f32.mxu0 0.0
  %255 = vmatmul.mubr.f32.gmra.mrb[0].mxu0 %v185
  %v256 = vpop.f32.mrb[0].mxu0
  %v257 = vadd.f32 0.0, %v256
  %v258 = vpop.f32.mrb[0].mxu0
  %259 = vdwg.mxu0
  %v260 = vmax.f32 %v257, 0.0
  %v261 = vsel %vm34, %v260, -inf
  %v262 = vrot.slane %v261, 4
  %v263 = vmax.f32 %v261, %v262
  %v264 = vrot.slane %v263, 2
  %v265 = vmax.f32 %v263, %v264
  %v266 = vrot.slane %v265, 1
  %v267 = vmax.f32 %v265, %v266
  %v268 = vsub.f32 %v260, %v267
  %v269 = vmul.f32 %v268, 1.442695
  %v270 = vpow.pop %v269
  %v271 = vsel %vm34, %v270, 0.0
  %v272 = vrot.slane %v271, 4
  %v273 = vadd.f32 %v271, %v272
  %v274 = vrot.slane %v273, 2
  %v275 = vadd.f32 %v273, %v274
  %v276 = vrot.slane %v275, 1
  %v277 = vadd.f32 %v275, %v276
  %v278 = vrcp.pop %v277
  %v279 = vmul.f32 %v270, %v278
  %280 = vst.msk [vmem:[#allocation2] sm:$0xff] %vm34, %v279
  %v281 = vmul.f32 %v279, 2.0
  %v282 = vld [vmem:[%s2] sm:$0xff]
  %v284 = vsel %vm34, %v279, 0
  %286 = vmatprep.subr.mxu0 0.0
  %287 = vmatpush1.msra.mxu0 %v281
  %288 = vmatprep.subr.mxu0 0.0
  %289 = vmatpush1.msra.mxu0 0.0
  %290 = vmatprep.subr.mxu0 0.0
  %291 = vmatpush1.msra.mxu0 0.0
  %292 = vmatprep.subr.mxu0 0.0
  %293 = vmatpush1.msra.mxu0 0.0
  %294 = vmatprep.subr.mxu0 0.0
  %295 = vmatpush1.msra.mxu0 0.0
  %296 = vmatprep.subr.mxu0 0.0
  %297 = vmatpush1.msra.mxu0 0.0
  %298 = vmatprep.subr.mxu0 0.0
  %299 = vmatpush1.msra.mxu0 0.0
  %300 = vmatprep.subr.mxu0 0.0
  %301 = vmatpush1.msra.mxu0 0.0
  %302 = vmatprep.subr.mxu0 0.0
  %303 = vmatpush1.msra.mxu0 0.0
  %304 = vmatprep.subr.mxu0 0.0
  %305 = vmatpush1.msra.mxu0 0.0
  %306 = vmatprep.subr.mxu0 0.0
  %307 = vmatpush1.msra.mxu0 0.0
  %308 = vmatprep.subr.mxu0 0.0
  %309 = vmatpush1.msra.mxu0 0.0
  %310 = vmatprep.subr.mxu0 0.0
  %311 = vmatpush1.msra.mxu0 0.0
  %312 = vmatprep.subr.mxu0 0.0
  %313 = vmatpush1.msra.mxu0 0.0
  %314 = vmatprep.subr.mxu0 0.0
  %315 = vmatpush1.msra.mxu0 0.0
  %316 = vmatprep.subr.mxu0 0.0
  %317 = vmatpush1.msra.mxu0 0.0
  %318 = vmatprep.subr.mxu0 0.0
  %319 = vmatpush1.msra.mxu0 0.0
  %320 = vmatprep.subr.mxu0 0.0
  %321 = vmatpush1.msra.mxu0 0.0
  %322 = vmatprep.subr.mxu0 0.0
  %323 = vmatpush1.msra.mxu0 0.0
  %324 = vmatprep.subr.mxu0 0.0
  %325 = vmatpush1.msra.mxu0 0.0
  %326 = vmatprep.subr.mxu0 0.0
  %327 = vmatpush1.msra.mxu0 0.0
  %328 = vmatprep.subr.mxu0 0.0
  %329 = vmatpush1.msra.mxu0 0.0
  %330 = vmatprep.subr.mxu0 0.0
  %331 = vmatpush1.msra.mxu0 0.0
  %332 = vmatprep.subr.mxu0 0.0
  %333 = vmatpush1.msra.mxu0 0.0
  %334 = vmatprep.subr.mxu0 0.0
  %335 = vmatpush1.msra.mxu0 0.0
  %336 = vmatprep.subr.mxu0 0.0
  %337 = vmatpush1.msra.mxu0 0.0
  %338 = vmatprep.subr.mxu0 0.0
  %339 = vmatpush1.msra.mxu0 0.0
  %340 = vmatprep.subr.mxu0 0.0
  %341 = vmatpush1.msra.mxu0 0.0
  %342 = vmatprep.subr.mxu0 0.0
  %343 = vmatpush1.msra.mxu0 0.0
  %344 = vmatprep.subr.mxu0 0.0
  %345 = vmatpush1.msra.mxu0 0.0
  %346 = vmatprep.subr.mxu0 0.0
  %347 = vmatpush1.msra.mxu0 0.0
  %348 = vmatprep.subr.mxu0 0.0
  %349 = vmatpush1.msra.mxu0 0.0
  %350 = vmatprep.mubr.f32.mxu0 0.0
  %351 = vmatmul.mubr.f32.gmra.mrb[0].mxu0 %v284
  %v352 = vpop.f32.mrb[0].mxu0
  %v353 = vadd.f32 0.0, %v352
  %v354 = vpop.f32.mrb[0].mxu0
  %355 = vdwg.mxu0
  %v356 = vsub.f32 %v353, %v282
  %358 = vrot.lane.b32.xlu0 %v356, 8
  %v359 = vpop.permute.xlu0 %358
  %vm361 = vcmask 130112
  %362 = vst.msk [vmem:[#allocation2] sm:$0xff] %vm361, %v359
  %v363 = vld [vmem:[#allocation2] sm:$0xff]
  %v364 = vld [vmem:[%s3] sm:$0xff]
  %v365 = vld [vmem:[%s3 + $0x8] sm:$0xff]
  %v366 = vld [vmem:[%s3 + $0x10] sm:$0xff]
  %v367 = vld [vmem:[%s3 + $0x18] sm:$0xff]
  %vm368 = vcmask 130048
  %v370 = vsel %vm368, %v363, 0
  %372 = vmatprep.subr.mxu0 %v365
  %373 = vmatpush1.msra.mxu0 %v364
  %374 = vmatprep.subr.mxu0 %v367
  %375 = vmatpush1.msra.mxu0 %v366
  %376 = vmatprep.subr.mxu0 0.0
  %377 = vmatpush1.msra.mxu0 0.0
  %378 = vmatprep.subr.mxu0 0.0
  %379 = vmatpush1.msra.mxu0 0.0
  %380 = vmatprep.subr.mxu0 0.0
  %381 = vmatpush1.msra.mxu0 0.0
  %382 = vmatprep.subr.mxu0 0.0
  %383 = vmatpush1.msra.mxu0 0.0
  %384 = vmatprep.subr.mxu0 0.0
  %385 = vmatpush1.msra.mxu0 0.0
  %386 = vmatprep.subr.mxu0 0.0
  %387 = vmatpush1.msra.mxu0 0.0
  %388 = vmatprep.subr.mxu0 0.0
  %389 = vmatpush1.msra.mxu0 0.0
  %390 = vmatprep.subr.mxu0 0.0
  %391 = vmatpush1.msra.mxu0 0.0
  %392 = vmatprep.subr.mxu0 0.0
  %393 = vmatpush1.msra.mxu0 0.0
  %394 = vmatprep.subr.mxu0 0.0
  %395 = vmatpush1.msra.mxu0 0.0
  %396 = vmatprep.subr.mxu0 0.0
  %397 = vmatpush1.msra.mxu0 0.0
  %398 = vmatprep.subr.mxu0 0.0
  %399 = vmatpush1.msra.mxu0 0.0
  %400 = vmatprep.subr.mxu0 0.0
  %401 = vmatpush1.msra.mxu0 0.0
  %402 = vmatprep.subr.mxu0 0.0
  %403 = vmatpush1.msra.mxu0 0.0
  %404 = vmatprep.subr.mxu0 0.0
  %405 = vmatpush1.msra.mxu0 0.0
  %406 = vmatprep.subr.mxu0 0.0
  %407 = vmatpush1.msra.mxu0 0.0
  %408 = vmatprep.subr.mxu0 0.0
  %409 = vmatpush1.msra.mxu0 0.0
  %410 = vmatprep.subr.mxu0 0.0
  %411 = vmatpush1.msra.mxu0 0.0
  %412 = vmatprep.subr.mxu0 0.0
  %413 = vmatpush1.msra.mxu0 0.0
  %414 = vmatprep.subr.mxu0 0.0
  %415 = vmatpush1.msra.mxu0 0.0
  %416 = vmatprep.subr.mxu0 0.0
  %417 = vmatpush1.msra.mxu0 0.0
  %418 = vmatprep.subr.mxu0 0.0
  %419 = vmatpush1.msra.mxu0 0.0
  %420 = vmatprep.subr.mxu0 0.0
  %421 = vmatpush1.msra.mxu0 0.0
  %422 = vmatprep.subr.mxu0 0.0
  %423 = vmatpush1.msra.mxu0 0.0
  %424 = vmatprep.subr.mxu0 0.0
  %425 = vmatpush1.msra.mxu0 0.0
  %426 = vmatprep.subr.mxu0 0.0
  %427 = vmatpush1.msra.mxu0 0.0
  %428 = vmatprep.subr.mxu0 0.0
  %429 = vmatpush1.msra.mxu0 0.0
  %430 = vmatprep.subr.mxu0 0.0
  %431 = vmatpush1.msra.mxu0 0.0
  %432 = vmatprep.subr.mxu0 0.0
  %433 = vmatpush1.msra.mxu0 0.0
  %434 = vmatprep.subr.mxu0 0.0
  %435 = vmatpush1.msra.mxu0 0.0
  %436 = vmatprep.mubr.f32.mxu0 0.0
  %437 = vmatmul.mubr.f32.gmra.mrb[0].mxu0 %v370
  %v438 = vpop.f32.mrb[0].mxu0
  %v439 = vadd.f32 0.0, %v438
  %v440 = vpop.f32.mrb[0].mxu0
  %v441 = vadd.f32 0.0, %v440
  %442 = vdwg.mxu0
  %443 = vmatprep.subr.mxu0 %v441
  %444 = vmatpush1.msra.mxu0 %v439
  %445 = vmatprep.subr.mxu0 0.0
  %446 = vmatpush1.msra.mxu0 0.0
  %447 = vmatprep.subr.mxu0 0.0
  %448 = vmatpush1.msra.mxu0 0.0
  %449 = vmatprep.subr.mxu0 0.0
  %450 = vmatpush1.msra.mxu0 0.0
  %451 = vmatprep.subr.mxu0 0.0
  %452 = vmatpush1.msra.mxu0 0.0
  %453 = vmatprep.subr.mxu0 0.0
  %454 = vmatpush1.msra.mxu0 0.0
  %455 = vmatprep.subr.mxu0 0.0
  %456 = vmatpush1.msra.mxu0 0.0
  %457 = vmatprep.subr.mxu0 0.0
  %458 = vmatpush1.msra.mxu0 0.0
  %459 = vmatprep.subr.mxu0 0.0
  %460 = vmatpush1.msra.mxu0 0.0
  %461 = vmatprep.subr.mxu0 0.0
  %462 = vmatpush1.msra.mxu0 0.0
  %463 = vmatprep.subr.mxu0 0.0
  %464 = vmatpush1.msra.mxu0 0.0
  %465 = vmatprep.subr.mxu0 0.0
  %466 = vmatpush1.msra.mxu0 0.0
  %467 = vmatprep.subr.mxu0 0.0
  %468 = vmatpush1.msra.mxu0 0.0
  %469 = vmatprep.subr.mxu0 0.0
  %470 = vmatpush1.msra.mxu0 0.0
  %471 = vmatprep.subr.mxu0 0.0
  %472 = vmatpush1.msra.mxu0 0.0
  %473 = vmatprep.subr.mxu0 0.0
  %474 = vmatpush1.msra.mxu0 0.0
  %475 = vmatprep.subr.mxu0 0.0
  %476 = vmatpush1.msra.mxu0 0.0
  %477 = vmatprep.subr.mxu0 0.0
  %478 = vmatpush1.msra.mxu0 0.0
  %479 = vmatprep.subr.mxu0 0.0
  %480 = vmatpush1.msra.mxu0 0.0
  %481 = vmatprep.subr.mxu0 0.0
  %482 = vmatpush1.msra.mxu0 0.0
  %483 = vmatprep.subr.mxu0 0.0
  %484 = vmatpush1.msra.mxu0 0.0
  %485 = vmatprep.subr.mxu0 0.0
  %486 = vmatpush1.msra.mxu0 0.0
  %487 = vmatprep.subr.mxu0 0.0
  %488 = vmatpush1.msra.mxu0 0.0
  %489 = vmatprep.subr.mxu0 0.0
  %490 = vmatpush1.msra.mxu0 0.0
  %491 = vmatprep.subr.mxu0 0.0
  %492 = vmatpush1.msra.mxu0 0.0
  %493 = vmatprep.subr.mxu0 0.0
  %494 = vmatpush1.msra.mxu0 0.0
  %495 = vmatprep.subr.mxu0 0.0
  %496 = vmatpush1.msra.mxu0 0.0
  %497 = vmatprep.subr.mxu0 0.0
  %498 = vmatpush1.msra.mxu0 0.0
  %499 = vmatprep.subr.mxu0 0.0
  %500 = vmatpush1.msra.mxu0 0.0
  %501 = vmatprep.subr.mxu0 0.0
  %502 = vmatpush1.msra.mxu0 0.0
  %503 = vmatprep.subr.mxu0 0.0
  %504 = vmatpush1.msra.mxu0 0.0
  %505 = vmatprep.subr.mxu0 0.0
  %506 = vmatpush1.msra.mxu0 0.0
  %507 = vmatprep.mubr.f32.mxu0 0.0
  %508 = vmatmul.mubr.f32.gmra.mrb[0].mxu0 %v36
  %v509 = vpop.f32.mrb[0].mxu0
  %v510 = vadd.f32 0.0, %v509
  %v511 = vpop.f32.mrb[0].mxu0
  %v512 = vadd.f32 0.0, %v511
  %513 = vdwg.mxu0
  %v514 = vld [vmem:[%s6] sm:$0xff]
  %v515 = vld [vmem:[%s6 + $0x8] sm:$0xff]
  %v516 = vld [vmem:[%s6 + $0x10] sm:$0xff]
  %v517 = vmul.f32 %v105, %v514
  %v518 = vmul.f32 %v510, %v515
  %v519 = vmul.f32 %v512, %v516
  %v520 = vld [vmem:[%s7] sm:$0xff]
  %v521 = vld [vmem:[%s8] sm:$0xff]
  %vm522 = vcmask 195584
  %v524 = vsel %vm522, %v520, 0
  %526 = vmatprep.subr.mxu0 0.0
  %527 = vmatpush1.msra.mxu0 %v517
  %528 = vmatprep.subr.mxu0 0.0
  %529 = vmatpush1.msra.mxu0 %v518
  %530 = vmatprep.subr.mxu0 0.0
  %531 = vmatpush1.msra.mxu0 %v519
  %532 = vmatprep.subr.mxu0 0.0
  %533 = vmatpush1.msra.mxu0 0.0
  %534 = vmatprep.subr.mxu0 0.0
  %535 = vmatpush1.msra.mxu0 0.0
  %536 = vmatprep.subr.mxu0 0.0
  %537 = vmatpush1.msra.mxu0 0.0
  %538 = vmatprep.subr.mxu0 0.0
  %539 = vmatpush1.msra.mxu0 0.0
  %540 = vmatprep.subr.mxu0 0.0
  %541 = vmatpush1.msra.mxu0 0.0
  %542 = vmatprep.subr.mxu0 0.0
  %543 = vmatpush1.msra.mxu0 0.0
  %544 = vmatprep.subr.mxu0 0.0
  %545 = vmatpush1.msra.mxu0 0.0
  %546 = vmatprep.subr.mxu0 0.0
  %547 = vmatpush1.msra.mxu0 0.0
  %548 = vmatprep.subr.mxu0 0.0
  %549 = vmatpush1.msra.mxu0 0.0
  %550 = vmatprep.subr.mxu0 0.0
  %551 = vmatpush1.msra.mxu0 0.0
  %552 = vmatprep.subr.mxu0 0.0
  %553 = vmatpush1.msra.mxu0 0.0
  %554 = vmatprep.subr.mxu0 0.0
  %555 = vmatpush1.msra.mxu0 0.0
  %556 = vmatprep.subr.mxu0 0.0
  %557 = vmatpush1.msra.mxu0 0.0
  %558 = vmatprep.subr.mxu0 0.0
  %559 = vmatpush1.msra.mxu0 0.0
  %560 = vmatprep.subr.mxu0 0.0
  %561 = vmatpush1.msra.mxu0 0.0
  %562 = vmatprep.subr.mxu0 0.0
  %563 = vmatpush1.msra.mxu0 0.0
  %564 = vmatprep.subr.mxu0 0.0
  %565 = vmatpush1.msra.mxu0 0.0
  %566 = vmatprep.subr.mxu0 0.0
  %567 = vmatpush1.msra.mxu0 0.0
  %568 = vmatprep.subr.mxu0 0.0
  %569 = vmatpush1.msra.mxu0 0.0
  %570 = vmatprep.subr.mxu0 0.0
  %571 = vmatpush1.msra.mxu0 0.0
  %572 = vmatprep.subr.mxu0 0.0
  %573 = vmatpush1.msra.mxu0 0.0
  %574 = vmatprep.subr.mxu0 0.0
  %575 = vmatpush1.msra.mxu0 0.0
  %576 = vmatprep.subr.mxu0 0.0
  %577 = vmatpush1.msra.mxu0 0.0
  %578 = vmatprep.subr.mxu0 0.0
  %579 = vmatpush1.msra.mxu0 0.0
  %580 = vmatprep.subr.mxu0 0.0
  %581 = vmatpush1.msra.mxu0 0.0
  %582 = vmatprep.subr.mxu0 0.0
  %583 = vmatpush1.msra.mxu0 0.0
  %584 = vmatprep.subr.mxu0 0.0
  %585 = vmatpush1.msra.mxu0 0.0
  %586 = vmatprep.subr.mxu0 0.0
  %587 = vmatpush1.msra.mxu0 0.0
  %588 = vmatprep.subr.mxu0 0.0
  %589 = vmatpush1.msra.mxu0 0.0
  %590 = vmatprep.mubr.f32.mxu0 0.0
  %591 = vmatmul.mubr.f32.gmra.mrb[0].mxu0 %v524
  %v592 = vpop.f32.mrb[0].mxu0
  %v593 = vadd.f32 %v521, %v592
  %v594 = vpop.f32.mrb[0].mxu0
  %595 = vdwg.mxu0
  %596 = vst [vmem:[%s9] sm:$0xff] %v593
  // Predicated region
  $region38: #{gcn_forward_batched.1} parent=0 // pred_check
    _
  $region39: #{gcn_forward_batched.1} parent=0 // pred_check_branch
    %598 = sbr.rel (0) target = $region41
  $region40: #{gcn_forward_batched.1} parent=0 // pred_region
    _
  $region41: #{gcn_forward_batched.1} parent=0 // pred_fallthru
    _
  // Predicated region
  $region42: #{gcn_forward_batched.1} parent=0 // pred_check
    _
  $region43: #{gcn_forward_batched.1} parent=0 // pred_check_branch
    %600 = sbr.rel (0) target = $region45
  $region44: #{gcn_forward_batched.1} parent=0 // pred_region
    _
  $region45: #{gcn_forward_batched.1} parent=0 // pred_fallthru
    _

</llo_original>
